<compile_context>
chip_gen: v5e
topology: v5e:2x2
jax: 0.10.0
libtpu: 0.0.40
codegen_flags: <defaults>
</compile_context>

<pallas_src>
import jax
import jax.numpy as jnp
from jax.experimental import pallas as pl
from jax.experimental.pallas import tpu as pltpu


def _pick_batch_block(B, c_in, c_out, T, N, itemsize,
                      vmem_block_budget=8 << 20, target_steps=8):
    """Largest batch block bb that (a) divides B, (b) keeps the double-buffered
    in/out blocks + in-kernel f32 intermediates under `vmem_block_budget`, and
    (c) leaves >= min(target_steps, B) grid steps for pipelining / megacore."""
    per_batch = (2 * (c_in + c_out) * T * N * itemsize        # double-buffered io
                 + 3 * max(c_in, c_out) * T * N * 4)          # xg / act / res values
    bb_cap = max(1, vmem_block_budget // per_batch)
    min_steps = min(target_steps, B)
    best = 1
    for bb in range(1, B + 1):
        if B % bb or bb > bb_cap:
            continue
        if B // bb >= min_steps:
            best = bb
    return best


def _make_kernel(bb, c_in, c_out, T, N, mode):
    """mode: 0 identity residual, 1 zero-pad residual (c_in < c_out),
    2 1x1-conv residual folded into the channel-mix weight (c_in > c_out)."""
    kc = 2 * c_in if mode == 2 else c_in
    f32 = jnp.float32

    def kernel(x_ref, k_ref, w_ref, b_ref, o_ref):
        x = x_ref[...]                       # [bb, c_in, T, N]
        k = k_ref[...]                       # [N, N]      (grid-invariant)
        w = w_ref[...]                       # [c_out, kc] (grid-invariant)
        bias = b_ref[...]                    # [c_out, 1]  (f32, grid-invariant)

        # (1) spatial graph conv over nodes: ONE fused MXU matmul for the whole
        # block (M = bb*c_in*T).  The collapse/split reshapes are free when
        # T % 8 == 0 (whole sublane groups per (b, c) row block).
        xg = jnp.dot(x.reshape(bb * c_in * T, N), k,
                     preferred_element_type=f32)
        xg = xg.astype(x.dtype).reshape(bb, c_in, T, N)

        # (2) activation & residual slabs, hoisted out of the time-step loop.
        if mode == 2:
            # [theta | mod] acts on [graph-conved x ; raw x] in one contraction.
            act = jnp.concatenate([xg, x], axis=1)           # [bb, 2*c_in, T, N]
            res = None
        elif mode == 1:
            act = xg
            res = jnp.concatenate(
                [x, jnp.zeros((bb, c_out - c_in, T, N), x.dtype)], axis=1)
        else:
            act = xg
            res = x

        # tiny channel weight broadcast once for the batched dot (hoisted).
        w_b = jnp.broadcast_to(w[None], (bb, c_out, kc))

        # (3) channel mix + bias + residual + relu, one time step at a time,
        # contracting c_in directly (no (W ⊗ I_T) kron => no T x redundant MACs).
        for t in range(T):                    # static unroll, T is small
            a_t = act[:, :, t, :]             # [bb, kc, N]
            y_t = jnp.einsum("boc,bcn->bon", w_b, a_t,
                             preferred_element_type=f32)     # [bb, c_out, N]
            y_t = y_t + bias                                  # f32 epilogue
            if res is not None:
                y_t = y_t + res[:, :, t, :].astype(f32)
            o_ref[:, :, t, :] = jnp.maximum(y_t, 0.0).astype(o_ref.dtype)

    return kernel


def spatio_conv_layer(x, graph_kernel, theta_w, theta_b, mod_w, mod_b,
                      *, compute_dtype=None):
    """Pallas implementation of SpatioConvLayer.forward.

    x            : [B, c_in, T, N]
    graph_kernel : [ks, N, N]
    theta_w      : [c_out, c_in]        (nn.Linear weight)
    theta_b      : [c_out]
    mod_w        : [c_out, c_in, 1, 1]  (1x1 Conv2d weight, used iff c_in > c_out)
    mod_b        : [c_out]
    compute_dtype: None (f32, exact) or jnp.bfloat16 (bf16 MXU operands on
                   v6e/v7x with f32 accumulation and epilogue).
    returns      : [B, c_out, T, N]
    """
    B, c_in, T, N = x.shape
    c_out = theta_w.shape[0]
    f32 = jnp.float32

    ksum = jnp.sum(graph_kernel, axis=0).astype(f32)          # [N, N]

    if c_in > c_out:
        mode = 2
        w = jnp.concatenate(
            [theta_w.astype(f32), mod_w[:, :, 0, 0].astype(f32)], axis=1)
        bias = theta_b.astype(f32) + mod_b.astype(f32)
    elif c_in < c_out:
        mode = 1
        w = theta_w.astype(f32)
        bias = theta_b.astype(f32)
    else:
        mode = 0
        w = theta_w.astype(f32)
        bias = theta_b.astype(f32)
    bias2d = bias[:, None]                                    # [c_out, 1], stays f32

    if compute_dtype is not None:
        x_in = x.astype(compute_dtype)
        ksum = ksum.astype(compute_dtype)
        w = w.astype(compute_dtype)
    else:
        x_in = x

    itemsize = jnp.dtype(x_in.dtype).itemsize
    bb = _pick_batch_block(B, c_in, c_out, T, N, itemsize)
    grid = (B // bb,)
    kc = w.shape[1]

    out = pl.pallas_call(
        _make_kernel(bb, c_in, c_out, T, N, mode),
        out_shape=jax.ShapeDtypeStruct((B, c_out, T, N), x.dtype),
        grid=grid,
        in_specs=[
            pl.BlockSpec((bb, c_in, T, N), lambda i: (i, 0, 0, 0)),
            pl.BlockSpec((N, N), lambda i: (0, 0)),
            pl.BlockSpec((c_out, kc), lambda i: (0, 0)),
            pl.BlockSpec((c_out, 1), lambda i: (0, 0)),
        ],
        out_specs=pl.BlockSpec((bb, c_out, T, N), lambda i: (i, 0, 0, 0)),
        compiler_params=pltpu.CompilerParams(
            dimension_semantics=("parallel",)),
    )(x_in, ksum, w, bias2d)
    return out


def _reference(x, graph_kernel, theta_w, theta_b, mod_w, mod_b):
    """Pure-JAX transcription of the PyTorch forward (for verification)."""
    B, c_in, T, N = x.shape
    c_out = theta_w.shape[0]
    if c_in > c_out:
        x_input = (jnp.einsum("bitn,oi->botn", x, mod_w[:, :, 0, 0])
                   + mod_b[None, :, None, None])
    elif c_in < c_out:
        x_input = jnp.concatenate(
            [x, jnp.zeros((B, c_out - c_in, T, N), x.dtype)], axis=1)
    else:
        x_input = x
    Ksum = jnp.sum(graph_kernel, axis=0)                  # [N, N]
    x_tmp = jnp.transpose(x, (0, 2, 1, 3))                # [B, T, c_in, N]
    x_ker = jnp.matmul(x_tmp, Ksum)                       # [B, T, c_in, N]
    x_ker = jnp.transpose(x_ker, (0, 1, 3, 2))            # [B, T, N, c_in]
    x_fig = x_ker @ theta_w.T + theta_b                   # [B, T, N, c_out]
    x_gconv = jnp.transpose(x_fig, (0, 3, 1, 2))          # [B, c_out, T, N]
    return jnp.maximum(x_gconv + x_input, 0.0)


def _init_params(key, c_in, c_out):
    k1, k2, k3, k4 = jax.random.split(key, 4)
    theta_w = jax.random.normal(k1, (c_out, c_in), jnp.float32) * 0.2
    theta_b = jax.random.normal(k2, (c_out,), jnp.float32) * 0.1
    mod_w = jax.random.normal(k3, (c_out, c_in, 1, 1), jnp.float32) * 0.2
    mod_b = jax.random.normal(k4, (c_out,), jnp.float32) * 0.1
    return theta_w, theta_b, mod_w, mod_b


if __name__ == "__main__":
    key = jax.random.PRNGKey(0)
    B, T, N, KS = 2, 8, 16, 3

    # Exercise all three residual branches: expand (c_in<c_out), equal, reduce.
    for (c_in, c_out) in ((4, 8), (8, 8), (8, 4)):
        key, kx, kg, kp = jax.random.split(key, 4)
        x = jax.random.normal(kx, (B, c_in, T, N), dtype=jnp.float32)
        graph_kernel = jax.random.normal(kg, (KS, N, N), dtype=jnp.float32) * 0.1
        theta_w, theta_b, mod_w, mod_b = _init_params(kp, c_in, c_out)

        out = jax.block_until_ready(
            spatio_conv_layer(x, graph_kernel, theta_w, theta_b, mod_w, mod_b))
        ref = jax.block_until_ready(
            _reference(x, graph_kernel, theta_w, theta_b, mod_w, mod_b))

        assert out.shape == (B, c_out, T, N), out.shape
        err = float(jnp.max(jnp.abs(out - ref)))
        assert err < 1e-4, (c_in, c_out, err)

    print("KERNEL_OK")
</pallas_src>

<mosaic_0001>
module attributes {stable_mosaic.version = 11 : i64} {
  func.func @kernel(%arg0: i32, %arg1: memref<1x4x8x16xf32, #tpu.memory_space<vmem>>, %arg2: memref<16x16xf32, #tpu.memory_space<vmem>>, %arg3: memref<8x4xf32, #tpu.memory_space<vmem>>, %arg4: memref<8x1xf32, #tpu.memory_space<vmem>>, %arg5: memref<1x8x8x16xf32, #tpu.memory_space<vmem>>) attributes {dimension_semantics = [#tpu.dimension_semantics<parallel>], iteration_bounds = array<i64: 2>, scalar_prefetch = 0 : i64, scratch_operands = 0 : i64, tpu.core_type = #tpu.core_type<tc>, window_params = [{transform_indices = @transform_0, window_bounds = array<i64: 1, 4, 8, 16>}, {pipeline_mode = #tpu.pipeline_mode<synchronous>, transform_indices = @transform_1, window_bounds = array<i64: 16, 16>}, {pipeline_mode = #tpu.pipeline_mode<synchronous>, transform_indices = @transform_2, window_bounds = array<i64: 8, 4>}, {pipeline_mode = #tpu.pipeline_mode<synchronous>, transform_indices = @transform_3, window_bounds = array<i64: 8, 1>}, {transform_indices = @transform_4, window_bounds = array<i64: 1, 8, 8, 16>}]} {
    %c0 = arith.constant 0 : index
    %c0_0 = arith.constant 0 : index
    %c0_1 = arith.constant 0 : index
    %c0_2 = arith.constant 0 : index
    %0 = vector.load %arg1[%c0, %c0_0, %c0_1, %c0_2] : memref<1x4x8x16xf32, #tpu.memory_space<vmem>>, vector<1x4x8x16xf32>
    %c0_3 = arith.constant 0 : index
    %c0_4 = arith.constant 0 : index
    %1 = vector.load %arg2[%c0_3, %c0_4] : memref<16x16xf32, #tpu.memory_space<vmem>>, vector<16x16xf32>
    %c0_5 = arith.constant 0 : index
    %c0_6 = arith.constant 0 : index
    %2 = vector.load %arg3[%c0_5, %c0_6] : memref<8x4xf32, #tpu.memory_space<vmem>>, vector<8x4xf32>
    %c0_7 = arith.constant 0 : index
    %c0_8 = arith.constant 0 : index
    %3 = vector.load %arg4[%c0_7, %c0_8] : memref<8x1xf32, #tpu.memory_space<vmem>>, vector<8x1xf32>
    %4 = vector.shape_cast %0 : vector<1x4x8x16xf32> to vector<32x16xf32>
    %cst = arith.constant dense<0.000000e+00> : vector<32x16xf32>
    %5 = tpu.matmul %4, %1, %cst {dimension_numbers = #tpu.dot_dimension_numbers<[1], [0], [0], [1], [0, 0, 1, 1], [], []>} : vector<32x16xf32>, vector<16x16xf32>, vector<32x16xf32> -> vector<32x16xf32>
    %6 = vector.shape_cast %5 : vector<32x16xf32> to vector<1x4x8x16xf32>
    %cst_9 = arith.constant 0.000000e+00 : f32
    %7 = vector.broadcast %cst_9 : f32 to vector<1x4x8x16xf32>
    %8 = tpu.concatenate %0, %7 in 1 : vector<1x4x8x16xf32>, vector<1x4x8x16xf32> -> vector<1x8x8x16xf32>
    %9 = vector.shape_cast %2 : vector<8x4xf32> to vector<1x8x4xf32>
    %10 = vector.extract_strided_slice %6 {offsets = [0, 0, 0, 0], sizes = [1, 4, 1, 16], strides = [1, 1, 1, 1]} : vector<1x4x8x16xf32> to vector<1x4x1x16xf32>
    %11 = vector.shape_cast %10 : vector<1x4x1x16xf32> to vector<1x4x16xf32>
    "tpu.trace_start"() <{level = 10 : i32, message = "boc,bcn->bon"}> : () -> ()
    %cst_10 = arith.constant dense<0.000000e+00> : vector<1x8x16xf32>
    %12 = tpu.matmul %9, %11, %cst_10 {dimension_numbers = #tpu.dot_dimension_numbers<[2], [1], [1], [2], [0, 0, 0, 1, 1, 2], [0], [0]>} : vector<1x8x4xf32>, vector<1x4x16xf32>, vector<1x8x16xf32> -> vector<1x8x16xf32>
    "tpu.trace_stop"() : () -> ()
    %13 = vector.shape_cast %3 : vector<8x1xf32> to vector<1x8x1xf32>
    %14 = vector.broadcast %13 : vector<1x8x1xf32> to vector<1x8x16xf32>
    %15 = arith.addf %12, %14 : vector<1x8x16xf32>
    %16 = vector.extract_strided_slice %8 {offsets = [0, 0, 0, 0], sizes = [1, 8, 1, 16], strides = [1, 1, 1, 1]} : vector<1x8x8x16xf32> to vector<1x8x1x16xf32>
    %17 = vector.shape_cast %16 : vector<1x8x1x16xf32> to vector<1x8x16xf32>
    %18 = arith.addf %15, %17 : vector<1x8x16xf32>
    %cst_11 = arith.constant 0.000000e+00 : f32
    %19 = vector.broadcast %cst_11 : f32 to vector<1x8x16xf32>
    %20 = arith.maximumf %18, %19 : vector<1x8x16xf32>
    %c0_12 = arith.constant 0 : index
    %c0_13 = arith.constant 0 : index
    %c0_14 = arith.constant 0 : index
    %c0_15 = arith.constant 0 : index
    %21 = vector.load %arg5[%c0_12, %c0_13, %c0_14, %c0_15] : memref<1x8x8x16xf32, #tpu.memory_space<vmem>>, vector<1x8x1x16xf32>
    %22 = vector.shape_cast %21 : vector<1x8x1x16xf32> to vector<1x8x16xf32>
    %23 = vector.shape_cast %20 : vector<1x8x16xf32> to vector<1x8x1x16xf32>
    tpu.vector_store %arg5[%c0_12, %c0_13, %c0_14, %c0_15], %23 {strides = array<i32>} : memref<1x8x8x16xf32, #tpu.memory_space<vmem>>, vector<1x8x1x16xf32>,
    %24 = vector.extract_strided_slice %6 {offsets = [0, 0, 1, 0], sizes = [1, 4, 1, 16], strides = [1, 1, 1, 1]} : vector<1x4x8x16xf32> to vector<1x4x1x16xf32>
    %25 = vector.shape_cast %24 : vector<1x4x1x16xf32> to vector<1x4x16xf32>
    "tpu.trace_start"() <{level = 10 : i32, message = "boc,bcn->bon"}> : () -> ()
    %cst_16 = arith.constant dense<0.000000e+00> : vector<1x8x16xf32>
    %26 = tpu.matmul %9, %25, %cst_16 {dimension_numbers = #tpu.dot_dimension_numbers<[2], [1], [1], [2], [0, 0, 0, 1, 1, 2], [0], [0]>} : vector<1x8x4xf32>, vector<1x4x16xf32>, vector<1x8x16xf32> -> vector<1x8x16xf32>
    "tpu.trace_stop"() : () -> ()
    %27 = vector.shape_cast %3 : vector<8x1xf32> to vector<1x8x1xf32>
    %28 = vector.broadcast %27 : vector<1x8x1xf32> to vector<1x8x16xf32>
    %29 = arith.addf %26, %28 : vector<1x8x16xf32>
    %30 = vector.extract_strided_slice %8 {offsets = [0, 0, 1, 0], sizes = [1, 8, 1, 16], strides = [1, 1, 1, 1]} : vector<1x8x8x16xf32> to vector<1x8x1x16xf32>
    %31 = vector.shape_cast %30 : vector<1x8x1x16xf32> to vector<1x8x16xf32>
    %32 = arith.addf %29, %31 : vector<1x8x16xf32>
    %cst_17 = arith.constant 0.000000e+00 : f32
    %33 = vector.broadcast %cst_17 : f32 to vector<1x8x16xf32>
    %34 = arith.maximumf %32, %33 : vector<1x8x16xf32>
    %c0_18 = arith.constant 0 : index
    %c0_19 = arith.constant 0 : index
    %c1 = arith.constant 1 : index
    %c0_20 = arith.constant 0 : index
    %35 = vector.load %arg5[%c0_18, %c0_19, %c1, %c0_20] : memref<1x8x8x16xf32, #tpu.memory_space<vmem>>, vector<1x8x1x16xf32>
    %36 = vector.shape_cast %35 : vector<1x8x1x16xf32> to vector<1x8x16xf32>
    %37 = vector.shape_cast %34 : vector<1x8x16xf32> to vector<1x8x1x16xf32>
    tpu.vector_store %arg5[%c0_18, %c0_19, %c1, %c0_20], %37 {strides = array<i32>} : memref<1x8x8x16xf32, #tpu.memory_space<vmem>>, vector<1x8x1x16xf32>,
    %38 = vector.extract_strided_slice %6 {offsets = [0, 0, 2, 0], sizes = [1, 4, 1, 16], strides = [1, 1, 1, 1]} : vector<1x4x8x16xf32> to vector<1x4x1x16xf32>
    %39 = vector.shape_cast %38 : vector<1x4x1x16xf32> to vector<1x4x16xf32>
    "tpu.trace_start"() <{level = 10 : i32, message = "boc,bcn->bon"}> : () -> ()
    %cst_21 = arith.constant dense<0.000000e+00> : vector<1x8x16xf32>
    %40 = tpu.matmul %9, %39, %cst_21 {dimension_numbers = #tpu.dot_dimension_numbers<[2], [1], [1], [2], [0, 0, 0, 1, 1, 2], [0], [0]>} : vector<1x8x4xf32>, vector<1x4x16xf32>, vector<1x8x16xf32> -> vector<1x8x16xf32>
    "tpu.trace_stop"() : () -> ()
    %41 = vector.shape_cast %3 : vector<8x1xf32> to vector<1x8x1xf32>
    %42 = vector.broadcast %41 : vector<1x8x1xf32> to vector<1x8x16xf32>
    %43 = arith.addf %40, %42 : vector<1x8x16xf32>
    %44 = vector.extract_strided_slice %8 {offsets = [0, 0, 2, 0], sizes = [1, 8, 1, 16], strides = [1, 1, 1, 1]} : vector<1x8x8x16xf32> to vector<1x8x1x16xf32>
    %45 = vector.shape_cast %44 : vector<1x8x1x16xf32> to vector<1x8x16xf32>
    %46 = arith.addf %43, %45 : vector<1x8x16xf32>
    %cst_22 = arith.constant 0.000000e+00 : f32
    %47 = vector.broadcast %cst_22 : f32 to vector<1x8x16xf32>
    %48 = arith.maximumf %46, %47 : vector<1x8x16xf32>
    %c0_23 = arith.constant 0 : index
    %c0_24 = arith.constant 0 : index
    %c2 = arith.constant 2 : index
    %c0_25 = arith.constant 0 : index
    %49 = vector.load %arg5[%c0_23, %c0_24, %c2, %c0_25] : memref<1x8x8x16xf32, #tpu.memory_space<vmem>>, vector<1x8x1x16xf32>
    %50 = vector.shape_cast %49 : vector<1x8x1x16xf32> to vector<1x8x16xf32>
    %51 = vector.shape_cast %48 : vector<1x8x16xf32> to vector<1x8x1x16xf32>
    tpu.vector_store %arg5[%c0_23, %c0_24, %c2, %c0_25], %51 {strides = array<i32>} : memref<1x8x8x16xf32, #tpu.memory_space<vmem>>, vector<1x8x1x16xf32>,
    %52 = vector.extract_strided_slice %6 {offsets = [0, 0, 3, 0], sizes = [1, 4, 1, 16], strides = [1, 1, 1, 1]} : vector<1x4x8x16xf32> to vector<1x4x1x16xf32>
    %53 = vector.shape_cast %52 : vector<1x4x1x16xf32> to vector<1x4x16xf32>
    "tpu.trace_start"() <{level = 10 : i32, message = "boc,bcn->bon"}> : () -> ()
    %cst_26 = arith.constant dense<0.000000e+00> : vector<1x8x16xf32>
    %54 = tpu.matmul %9, %53, %cst_26 {dimension_numbers = #tpu.dot_dimension_numbers<[2], [1], [1], [2], [0, 0, 0, 1, 1, 2], [0], [0]>} : vector<1x8x4xf32>, vector<1x4x16xf32>, vector<1x8x16xf32> -> vector<1x8x16xf32>
    "tpu.trace_stop"() : () -> ()
    %55 = vector.shape_cast %3 : vector<8x1xf32> to vector<1x8x1xf32>
    %56 = vector.broadcast %55 : vector<1x8x1xf32> to vector<1x8x16xf32>
    %57 = arith.addf %54, %56 : vector<1x8x16xf32>
    %58 = vector.extract_strided_slice %8 {offsets = [0, 0, 3, 0], sizes = [1, 8, 1, 16], strides = [1, 1, 1, 1]} : vector<1x8x8x16xf32> to vector<1x8x1x16xf32>
    %59 = vector.shape_cast %58 : vector<1x8x1x16xf32> to vector<1x8x16xf32>
    %60 = arith.addf %57, %59 : vector<1x8x16xf32>
    %cst_27 = arith.constant 0.000000e+00 : f32
    %61 = vector.broadcast %cst_27 : f32 to vector<1x8x16xf32>
    %62 = arith.maximumf %60, %61 : vector<1x8x16xf32>
    %c0_28 = arith.constant 0 : index
    %c0_29 = arith.constant 0 : index
    %c3 = arith.constant 3 : index
    %c0_30 = arith.constant 0 : index
    %63 = vector.load %arg5[%c0_28, %c0_29, %c3, %c0_30] : memref<1x8x8x16xf32, #tpu.memory_space<vmem>>, vector<1x8x1x16xf32>
    %64 = vector.shape_cast %63 : vector<1x8x1x16xf32> to vector<1x8x16xf32>
    %65 = vector.shape_cast %62 : vector<1x8x16xf32> to vector<1x8x1x16xf32>
    tpu.vector_store %arg5[%c0_28, %c0_29, %c3, %c0_30], %65 {strides = array<i32>} : memref<1x8x8x16xf32, #tpu.memory_space<vmem>>, vector<1x8x1x16xf32>,
    %66 = vector.extract_strided_slice %6 {offsets = [0, 0, 4, 0], sizes = [1, 4, 1, 16], strides = [1, 1, 1, 1]} : vector<1x4x8x16xf32> to vector<1x4x1x16xf32>
    %67 = vector.shape_cast %66 : vector<1x4x1x16xf32> to vector<1x4x16xf32>
    "tpu.trace_start"() <{level = 10 : i32, message = "boc,bcn->bon"}> : () -> ()
    %cst_31 = arith.constant dense<0.000000e+00> : vector<1x8x16xf32>
    %68 = tpu.matmul %9, %67, %cst_31 {dimension_numbers = #tpu.dot_dimension_numbers<[2], [1], [1], [2], [0, 0, 0, 1, 1, 2], [0], [0]>} : vector<1x8x4xf32>, vector<1x4x16xf32>, vector<1x8x16xf32> -> vector<1x8x16xf32>
    "tpu.trace_stop"() : () -> ()
    %69 = vector.shape_cast %3 : vector<8x1xf32> to vector<1x8x1xf32>
    %70 = vector.broadcast %69 : vector<1x8x1xf32> to vector<1x8x16xf32>
    %71 = arith.addf %68, %70 : vector<1x8x16xf32>
    %72 = vector.extract_strided_slice %8 {offsets = [0, 0, 4, 0], sizes = [1, 8, 1, 16], strides = [1, 1, 1, 1]} : vector<1x8x8x16xf32> to vector<1x8x1x16xf32>
    %73 = vector.shape_cast %72 : vector<1x8x1x16xf32> to vector<1x8x16xf32>
    %74 = arith.addf %71, %73 : vector<1x8x16xf32>
    %cst_32 = arith.constant 0.000000e+00 : f32
    %75 = vector.broadcast %cst_32 : f32 to vector<1x8x16xf32>
    %76 = arith.maximumf %74, %75 : vector<1x8x16xf32>
    %c0_33 = arith.constant 0 : index
    %c0_34 = arith.constant 0 : index
    %c4 = arith.constant 4 : index
    %c0_35 = arith.constant 0 : index
    %77 = vector.load %arg5[%c0_33, %c0_34, %c4, %c0_35] : memref<1x8x8x16xf32, #tpu.memory_space<vmem>>, vector<1x8x1x16xf32>
    %78 = vector.shape_cast %77 : vector<1x8x1x16xf32> to vector<1x8x16xf32>
    %79 = vector.shape_cast %76 : vector<1x8x16xf32> to vector<1x8x1x16xf32>
    tpu.vector_store %arg5[%c0_33, %c0_34, %c4, %c0_35], %79 {strides = array<i32>} : memref<1x8x8x16xf32, #tpu.memory_space<vmem>>, vector<1x8x1x16xf32>,
    %80 = vector.extract_strided_slice %6 {offsets = [0, 0, 5, 0], sizes = [1, 4, 1, 16], strides = [1, 1, 1, 1]} : vector<1x4x8x16xf32> to vector<1x4x1x16xf32>
    %81 = vector.shape_cast %80 : vector<1x4x1x16xf32> to vector<1x4x16xf32>
    "tpu.trace_start"() <{level = 10 : i32, message = "boc,bcn->bon"}> : () -> ()
    %cst_36 = arith.constant dense<0.000000e+00> : vector<1x8x16xf32>
    %82 = tpu.matmul %9, %81, %cst_36 {dimension_numbers = #tpu.dot_dimension_numbers<[2], [1], [1], [2], [0, 0, 0, 1, 1, 2], [0], [0]>} : vector<1x8x4xf32>, vector<1x4x16xf32>, vector<1x8x16xf32> -> vector<1x8x16xf32>
    "tpu.trace_stop"() : () -> ()
    %83 = vector.shape_cast %3 : vector<8x1xf32> to vector<1x8x1xf32>
    %84 = vector.broadcast %83 : vector<1x8x1xf32> to vector<1x8x16xf32>
    %85 = arith.addf %82, %84 : vector<1x8x16xf32>
    %86 = vector.extract_strided_slice %8 {offsets = [0, 0, 5, 0], sizes = [1, 8, 1, 16], strides = [1, 1, 1, 1]} : vector<1x8x8x16xf32> to vector<1x8x1x16xf32>
    %87 = vector.shape_cast %86 : vector<1x8x1x16xf32> to vector<1x8x16xf32>
    %88 = arith.addf %85, %87 : vector<1x8x16xf32>
    %cst_37 = arith.constant 0.000000e+00 : f32
    %89 = vector.broadcast %cst_37 : f32 to vector<1x8x16xf32>
    %90 = arith.maximumf %88, %89 : vector<1x8x16xf32>
    %c0_38 = arith.constant 0 : index
    %c0_39 = arith.constant 0 : index
    %c5 = arith.constant 5 : index
    %c0_40 = arith.constant 0 : index
    %91 = vector.load %arg5[%c0_38, %c0_39, %c5, %c0_40] : memref<1x8x8x16xf32, #tpu.memory_space<vmem>>, vector<1x8x1x16xf32>
    %92 = vector.shape_cast %91 : vector<1x8x1x16xf32> to vector<1x8x16xf32>
    %93 = vector.shape_cast %90 : vector<1x8x16xf32> to vector<1x8x1x16xf32>
    tpu.vector_store %arg5[%c0_38, %c0_39, %c5, %c0_40], %93 {strides = array<i32>} : memref<1x8x8x16xf32, #tpu.memory_space<vmem>>, vector<1x8x1x16xf32>,
    %94 = vector.extract_strided_slice %6 {offsets = [0, 0, 6, 0], sizes = [1, 4, 1, 16], strides = [1, 1, 1, 1]} : vector<1x4x8x16xf32> to vector<1x4x1x16xf32>
    %95 = vector.shape_cast %94 : vector<1x4x1x16xf32> to vector<1x4x16xf32>
    "tpu.trace_start"() <{level = 10 : i32, message = "boc,bcn->bon"}> : () -> ()
    %cst_41 = arith.constant dense<0.000000e+00> : vector<1x8x16xf32>
    %96 = tpu.matmul %9, %95, %cst_41 {dimension_numbers = #tpu.dot_dimension_numbers<[2], [1], [1], [2], [0, 0, 0, 1, 1, 2], [0], [0]>} : vector<1x8x4xf32>, vector<1x4x16xf32>, vector<1x8x16xf32> -> vector<1x8x16xf32>
    "tpu.trace_stop"() : () -> ()
    %97 = vector.shape_cast %3 : vector<8x1xf32> to vector<1x8x1xf32>
    %98 = vector.broadcast %97 : vector<1x8x1xf32> to vector<1x8x16xf32>
    %99 = arith.addf %96, %98 : vector<1x8x16xf32>
    %100 = vector.extract_strided_slice %8 {offsets = [0, 0, 6, 0], sizes = [1, 8, 1, 16], strides = [1, 1, 1, 1]} : vector<1x8x8x16xf32> to vector<1x8x1x16xf32>
    %101 = vector.shape_cast %100 : vector<1x8x1x16xf32> to vector<1x8x16xf32>
    %102 = arith.addf %99, %101 : vector<1x8x16xf32>
    %cst_42 = arith.constant 0.000000e+00 : f32
    %103 = vector.broadcast %cst_42 : f32 to vector<1x8x16xf32>
    %104 = arith.maximumf %102, %103 : vector<1x8x16xf32>
    %c0_43 = arith.constant 0 : index
    %c0_44 = arith.constant 0 : index
    %c6 = arith.constant 6 : index
    %c0_45 = arith.constant 0 : index
    %105 = vector.load %arg5[%c0_43, %c0_44, %c6, %c0_45] : memref<1x8x8x16xf32, #tpu.memory_space<vmem>>, vector<1x8x1x16xf32>
    %106 = vector.shape_cast %105 : vector<1x8x1x16xf32> to vector<1x8x16xf32>
    %107 = vector.shape_cast %104 : vector<1x8x16xf32> to vector<1x8x1x16xf32>
    tpu.vector_store %arg5[%c0_43, %c0_44, %c6, %c0_45], %107 {strides = array<i32>} : memref<1x8x8x16xf32, #tpu.memory_space<vmem>>, vector<1x8x1x16xf32>,
    %108 = vector.extract_strided_slice %6 {offsets = [0, 0, 7, 0], sizes = [1, 4, 1, 16], strides = [1, 1, 1, 1]} : vector<1x4x8x16xf32> to vector<1x4x1x16xf32>
    %109 = vector.shape_cast %108 : vector<1x4x1x16xf32> to vector<1x4x16xf32>
    "tpu.trace_start"() <{level = 10 : i32, message = "boc,bcn->bon"}> : () -> ()
    %cst_46 = arith.constant dense<0.000000e+00> : vector<1x8x16xf32>
    %110 = tpu.matmul %9, %109, %cst_46 {dimension_numbers = #tpu.dot_dimension_numbers<[2], [1], [1], [2], [0, 0, 0, 1, 1, 2], [0], [0]>} : vector<1x8x4xf32>, vector<1x4x16xf32>, vector<1x8x16xf32> -> vector<1x8x16xf32>
    "tpu.trace_stop"() : () -> ()
    %111 = vector.shape_cast %3 : vector<8x1xf32> to vector<1x8x1xf32>
    %112 = vector.broadcast %111 : vector<1x8x1xf32> to vector<1x8x16xf32>
    %113 = arith.addf %110, %112 : vector<1x8x16xf32>
    %114 = vector.extract_strided_slice %8 {offsets = [0, 0, 7, 0], sizes = [1, 8, 1, 16], strides = [1, 1, 1, 1]} : vector<1x8x8x16xf32> to vector<1x8x1x16xf32>
    %115 = vector.shape_cast %114 : vector<1x8x1x16xf32> to vector<1x8x16xf32>
    %116 = arith.addf %113, %115 : vector<1x8x16xf32>
    %cst_47 = arith.constant 0.000000e+00 : f32
    %117 = vector.broadcast %cst_47 : f32 to vector<1x8x16xf32>
    %118 = arith.maximumf %116, %117 : vector<1x8x16xf32>
    %c0_48 = arith.constant 0 : index
    %c0_49 = arith.constant 0 : index
    %c7 = arith.constant 7 : index
    %c0_50 = arith.constant 0 : index
    %119 = vector.load %arg5[%c0_48, %c0_49, %c7, %c0_50] : memref<1x8x8x16xf32, #tpu.memory_space<vmem>>, vector<1x8x1x16xf32>
    %120 = vector.shape_cast %119 : vector<1x8x1x16xf32> to vector<1x8x16xf32>
    %121 = vector.shape_cast %118 : vector<1x8x16xf32> to vector<1x8x1x16xf32>
    tpu.vector_store %arg5[%c0_48, %c0_49, %c7, %c0_50], %121 {strides = array<i32>} : memref<1x8x8x16xf32, #tpu.memory_space<vmem>>, vector<1x8x1x16xf32>,
    return
  }
  func.func @transform_0(%arg0: i32) -> (i32, i32, i32, i32) {
    %c0_i32 = arith.constant 0 : i32
    %c0_i32_0 = arith.constant 0 : i32
    %c0_i32_1 = arith.constant 0 : i32
    %c0_i32_2 = arith.constant 0 : i32
    return %arg0, %c0_i32, %c0_i32_0, %c0_i32_1 : i32, i32, i32, i32
  }
  func.func @transform_1(%arg0: i32) -> (i32, i32) {
    %c0_i32 = arith.constant 0 : i32
    %c0_i32_0 = arith.constant 0 : i32
    %c0_i32_1 = arith.constant 0 : i32
    return %c0_i32, %c0_i32_0 : i32, i32
  }
  func.func @transform_2(%arg0: i32) -> (i32, i32) {
    %c0_i32 = arith.constant 0 : i32
    %c0_i32_0 = arith.constant 0 : i32
    %c0_i32_1 = arith.constant 0 : i32
    return %c0_i32, %c0_i32_0 : i32, i32
  }
  func.func @transform_3(%arg0: i32) -> (i32, i32) {
    %c0_i32 = arith.constant 0 : i32
    %c0_i32_0 = arith.constant 0 : i32
    %c0_i32_1 = arith.constant 0 : i32
    return %c0_i32, %c0_i32_0 : i32, i32
  }
  func.func @transform_4(%arg0: i32) -> (i32, i32, i32, i32) {
    %c0_i32 = arith.constant 0 : i32
    %c0_i32_0 = arith.constant 0 : i32
    %c0_i32_1 = arith.constant 0 : i32
    %c0_i32_2 = arith.constant 0 : i32
    return %arg0, %c0_i32, %c0_i32_0, %c0_i32_1 : i32, i32, i32, i32
  }
}

</mosaic_0001>

<llo_original>
// kernel: tpu_custom_call.1
$region0: #{tpu_custom_call.1}
  #allocation0 [shape = 'u32[]', space=smem, size = 0x4, offset = 0x4, fixed_abs, tag = 'smem constant byte address 0x4 - core index']
  #allocation1 [shape = 'u32[72,128]{1,0:T(1,128)}', space=vmem, size = 0x9000, scoped, tag = 'internal scratch']
  %s0 = inlined_call_operand.hbm [shape: f32[2,4,8,16], index: 0, kind: input, shape index: {}]
  %s1 = inlined_call_operand.vmem [shape: f32[16,16], index: 1, kind: input, shape index: {}]
  %s2 = inlined_call_operand.vmem [shape: f32[8,4], index: 2, kind: input, shape index: {}]
  %s3 = inlined_call_operand.vmem [shape: f32[8,1], index: 3, kind: input, shape index: {}]
  %s4 = inlined_call_operand.hbm [shape: f32[2,8,8,16], index: 4, kind: output, shape index: {}]
  %s5 = sld [smem:[#allocation0]]
  $region53: #{tpu_custom_call.1} parent=0
    _
  %s7 = ssub.s32 1, %s5
  %s8 = scalar_select 0, %s7, %s5
  $region1: #{tpu_custom_call.1} parent=0
    #allocation2 [shape = 'u8[32768]{0}', space=vmem, size = 0x8000, scoped, tag = 'input window, operand 0']
    #allocation3 [shape = 's32[2]{0}', space=sflag, size = 0x8, scoped, tag = 'scoped memory for tpu_custom_call.1']
    #allocation4 [shape = 's32[2]{0}', space=sflag, size = 0x8, scoped, tag = 'scoped memory for tpu_custom_call.1']
    #allocation5 [shape = 'u8[65536]{0}', space=vmem, size = 0x10000, scoped, tag = 'output window, operand 0']
    %9 = vsyncpa [#allocation3], 0
    %s10 = scalar_lea.sflag [#allocation3], 1
    %11 = vsyncpa %s10, 0
    %12 = vsyncpa [#allocation4], 0
    %s13 = scalar_lea.sflag [#allocation4], 1
    %14 = vsyncpa %s13, 0
    loop: start=0, step=1, limit=4
    $region2: #{tpu_custom_call.1} parent=1 // loop_pre_header
      _
    $region3: #{tpu_custom_call.1} parent=1 // loop_header
      %s16 = sphi 0, %s20
      %p17 = scmp.ge.s32.totalorder %s16, 4
      %s26 = sphi 0, %s28
      %s29 = sphi 0, %s26
      %s30 = sphi 0, %s29
      %s46 = sphi 0, %s30
      %s50 = sphi 0, %s50
      %s52 = sphi 0, %s50
      %s53 = sphi 0, %s52
      %s67 = sphi 0, %s53
      %s71 = sphi 0, %s71
      %s73 = sphi 0, %s71
      %s74 = sphi 0, %s73
      %s88 = sphi 0, %s74
      %s92 = sphi 0, %s92
      %s94 = sphi 0, %s92
      %s95 = sphi 0, %s94
      %s109 = sphi 0, %s95
      %s115 = sphi 0, %s117
      %s118 = sphi 0, %s115
      %s119 = sphi 0, %s118
      %s135 = sphi 0, %s119
    $region4: #{tpu_custom_call.1} parent=1 // loop_header_branch
      %19 = sbr.rel (%p17) target = $region8
    $region5: #{tpu_custom_call.1} parent=1 // loop_body
      %s21 = ssub.s32 %s16, 1
      %s22 = ssub.s32 %s16, 2
      %s23 = sadd.s32 %s16, 1
      %s24 = ssub.s32 %s16, %s23
      %p25 = scmp.eq.s32.totalorder %s24, 0
      %s27 = sadd.s32 %s26, 1
      %s28 = scalar_select %p25, %s26, %s27
      %p31 = pneg %p25
      %p32 = scmp.eq.s32.totalorder %s16, 1
      %p33 = por %p31, %p32
      %p34 = scmp.ne.s32.totalorder %s26, %s29
      %p35 = scmp.eq.s32.totalorder %s16, 0
      %p36 = por %p34, %p35
      %p37 = scmp.ne.s32.totalorder %s26, %s29
      %p38 = scmp.eq.s32.totalorder %s21, 1
      %p39 = por %p37, %p38
      %p40 = scmp.ne.s32.totalorder %s29, %s30
      %p41 = scmp.eq.s32.totalorder %s21, 0
      %p42 = por %p40, %p41
      %p43 = scmp.ne.s32.totalorder %s29, %s30
      %p44 = scmp.eq.s32.totalorder %s22, 1
      %p45 = por %p43, %p44
      %p47 = scmp.ne.s32.totalorder %s30, %s46
      %p48 = scmp.eq.s32.totalorder %s22, 0
      %p49 = por %p47, %p48
      %s51 = sadd.s32 %s50, 1
      %p54 = scmp.eq.s32.totalorder %s16, 1
      %p55 = scmp.ne.s32.totalorder %s50, %s52
      %p56 = scmp.eq.s32.totalorder %s16, 0
      %p57 = por %p55, %p56
      %p58 = scmp.ne.s32.totalorder %s50, %s52
      %p59 = scmp.eq.s32.totalorder %s21, 1
      %p60 = por %p58, %p59
      %p61 = scmp.ne.s32.totalorder %s52, %s53
      %p62 = scmp.eq.s32.totalorder %s21, 0
      %p63 = por %p61, %p62
      %p64 = scmp.ne.s32.totalorder %s52, %s53
      %p65 = scmp.eq.s32.totalorder %s22, 1
      %p66 = por %p64, %p65
      %p68 = scmp.ne.s32.totalorder %s53, %s67
      %p69 = scmp.eq.s32.totalorder %s22, 0
      %p70 = por %p68, %p69
      %s72 = sadd.s32 %s71, 1
      %p75 = scmp.eq.s32.totalorder %s16, 1
      %p76 = scmp.ne.s32.totalorder %s71, %s73
      %p77 = scmp.eq.s32.totalorder %s16, 0
      %p78 = por %p76, %p77
      %p79 = scmp.ne.s32.totalorder %s71, %s73
      %p80 = scmp.eq.s32.totalorder %s21, 1
      %p81 = por %p79, %p80
      %p82 = scmp.ne.s32.totalorder %s73, %s74
      %p83 = scmp.eq.s32.totalorder %s21, 0
      %p84 = por %p82, %p83
      %p85 = scmp.ne.s32.totalorder %s73, %s74
      %p86 = scmp.eq.s32.totalorder %s22, 1
      %p87 = por %p85, %p86
      %p89 = scmp.ne.s32.totalorder %s74, %s88
      %p90 = scmp.eq.s32.totalorder %s22, 0
      %p91 = por %p89, %p90
      %s93 = sadd.s32 %s92, 1
      %p96 = scmp.eq.s32.totalorder %s16, 1
      %p97 = scmp.ne.s32.totalorder %s92, %s94
      %p98 = scmp.eq.s32.totalorder %s16, 0
      %p99 = por %p97, %p98
      %p100 = scmp.ne.s32.totalorder %s92, %s94
      %p101 = scmp.eq.s32.totalorder %s21, 1
      %p102 = por %p100, %p101
      %p103 = scmp.ne.s32.totalorder %s94, %s95
      %p104 = scmp.eq.s32.totalorder %s21, 0
      %p105 = por %p103, %p104
      %p106 = scmp.ne.s32.totalorder %s94, %s95
      %p107 = scmp.eq.s32.totalorder %s22, 1
      %p108 = por %p106, %p107
      %p110 = scmp.ne.s32.totalorder %s95, %s109
      %p111 = scmp.eq.s32.totalorder %s22, 0
      %p112 = por %p110, %p111
      %s113 = ssub.s32 %s16, %s23
      %p114 = scmp.eq.s32.totalorder %s113, 0
      %s116 = sadd.s32 %s115, 1
      %s117 = scalar_select %p114, %s115, %s116
      %p120 = pneg %p114
      %p121 = scmp.eq.s32.totalorder %s16, 1
      %p122 = por %p120, %p121
      %p123 = scmp.ne.s32.totalorder %s115, %s118
      %p124 = scmp.eq.s32.totalorder %s16, 0
      %p125 = por %p123, %p124
      %p126 = scmp.ne.s32.totalorder %s115, %s118
      %p127 = scmp.eq.s32.totalorder %s21, 1
      %p128 = por %p126, %p127
      %p129 = scmp.ne.s32.totalorder %s118, %s119
      %p130 = scmp.eq.s32.totalorder %s21, 0
      %p131 = por %p129, %p130
      %p132 = scmp.ne.s32.totalorder %s118, %s119
      %p133 = scmp.eq.s32.totalorder %s22, 1
      %p134 = por %p132, %p133
      %p136 = scmp.ne.s32.totalorder %s119, %s135
      %p137 = scmp.eq.s32.totalorder %s22, 0
      %p138 = por %p136, %p137
      %p139 = scmp.le.s32.totalorder 1, %s16
      %p140 = scmp.lt.s32.totalorder %s16, 3
      %p141 = pnand %p139, %p140
      %p142 = pneg %p141
      // Predicated region
      $region9: #{tpu_custom_call.1} parent=5 // pred_check
        _
      $region10: #{tpu_custom_call.1} parent=5 // pred_check_branch
        %144 = sbr.rel (%p141) target = $region12
      $region11: #{tpu_custom_call.1} parent=5 // pred_region
        %s145 = ssub.s32 %s16, 1
        // Predicated region
        $region13: #{tpu_custom_call.1} parent=11 // pred_check
          %p146 = pneg %p63
        $region14: #{tpu_custom_call.1} parent=11 // pred_check_branch
          %148 = sbr.rel (%p146) target = $region16
        $region15: #{tpu_custom_call.1} parent=11 // pred_region
          _
        $region16: #{tpu_custom_call.1} parent=11 // pred_fallthru
          _
        // Predicated region
        $region17: #{tpu_custom_call.1} parent=11 // pred_check
          %p149 = pneg %p84
        $region18: #{tpu_custom_call.1} parent=11 // pred_check_branch
          %151 = sbr.rel (%p149) target = $region20
        $region19: #{tpu_custom_call.1} parent=11 // pred_region
          _
        $region20: #{tpu_custom_call.1} parent=11 // pred_fallthru
          _
        // Predicated region
        $region21: #{tpu_custom_call.1} parent=11 // pred_check
          %p152 = pneg %p105
        $region22: #{tpu_custom_call.1} parent=11 // pred_check_branch
          %154 = sbr.rel (%p152) target = $region24
        $region23: #{tpu_custom_call.1} parent=11 // pred_region
          _
        $region24: #{tpu_custom_call.1} parent=11 // pred_fallthru
          _
      $region12: #{tpu_custom_call.1} parent=5 // pred_fallthru
        _
      %p155 = scmp.lt.s32.totalorder %s16, 2
      // Predicated region
      $region25: #{tpu_custom_call.1} parent=5 // pred_check
        %p156 = pneg %p155
      $region26: #{tpu_custom_call.1} parent=5 // pred_check_branch
        %158 = sbr.rel (%p156) target = $region28
      $region27: #{tpu_custom_call.1} parent=5 // pred_region
        // Predicated region
        $region29: #{tpu_custom_call.1} parent=27 // pred_check
          %p159 = pneg %p36
        $region30: #{tpu_custom_call.1} parent=27 // pred_check_branch
          %161 = sbr.rel (%p159) target = $region32
        $region31: #{tpu_custom_call.1} parent=27 // pred_region
          %s162 = sand.u32 %s26, 1
          %s163 = scalar_lea.sflag [#allocation3], %s162
          %s164 = sand.u32 %s26, 1
          %s165 = smul.addr %s164, 32
          %s166 = scalar_lea.vmem [#allocation2], %s165
          %168 = vsyncadd %s163, 0
          %s169 = smul.addr %s16, 4
          %s170 = smul.addr %s169, 8
          %s171 = scalar_lea.hbm %s0, %s170
          %s172 = sshll.u32 %s171, 4
          %s173 = int_to_ptr.hbm [resolvable:$true] %s172
          %s174 = sshll.u32 %s166, 4
          %s175 = int_to_ptr.vmem [resolvable:$true] %s174
          %180 = dma.hbm_to_vmem [thread:$0]  %s173, 512, %s175, %s163, 128, 128, 8
        $region32: #{tpu_custom_call.1} parent=27 // pred_fallthru
          _
      $region28: #{tpu_custom_call.1} parent=5 // pred_fallthru
        _
      %p181 = scmp.le.s32.totalorder 1, %s16
      %p182 = scmp.lt.s32.totalorder %s16, 3
      %p183 = pnand %p181, %p182
      %p184 = pneg %p183
      // Predicated region
      $region33: #{tpu_custom_call.1} parent=5 // pred_check
        _
      $region34: #{tpu_custom_call.1} parent=5 // pred_check_branch
        %186 = sbr.rel (%p183) target = $region36
      $region35: #{tpu_custom_call.1} parent=5 // pred_region
        %s187 = ssub.s32 %s16, 1
        %s188 = sand.u32 %s29, 1
        %s189 = scalar_lea.sflag [#allocation3], %s188
        %s190 = sand.u32 %s29, 1
        %s191 = smul.addr %s190, 32
        %s192 = scalar_lea.vmem [#allocation2], %s191
        // Predicated region
        $region37: #{tpu_custom_call.1} parent=35 // pred_check
          %p193 = pneg %p42
        $region38: #{tpu_custom_call.1} parent=35 // pred_check_branch
          %195 = sbr.rel (%p193) target = $region40
        $region39: #{tpu_custom_call.1} parent=35 // pred_region
          %197 = dma.done %s189, 512
        $region40: #{tpu_custom_call.1} parent=35 // pred_fallthru
          _
        %s198 = sand.u32 %s29, 1
        %s199 = scalar_lea.sflag [#allocation3], %s198
        %s200 = sand.u32 %s29, 1
        %s201 = smul.addr %s200, 32
        %s202 = scalar_lea.vmem [#allocation2], %s201
        %p203 = pneg %p42
        %p204 = pneg %p39
        %p205 = pneg %p63
        %p206 = pneg %p60
        %p207 = pneg %p84
        %p208 = pneg %p81
        %p209 = pneg %p105
        %p210 = pneg %p102
        %p211 = pneg %p131
        %p212 = pneg %p128
        %s213 = sand.u32 %s118, 1
        %s214 = scalar_lea.sflag [#allocation4], %s213
        %s215 = sand.u32 %s118, 1
        %s216 = smul.addr %s215, 64
        %s217 = scalar_lea.vmem [#allocation5], %s216
        %v218 = vld [vmem:[%s192] sm:$0xff]
        %v219 = vld [vmem:[%s192 + $0x8] sm:$0xff]
        %v220 = vld [vmem:[%s192 + $0x10] sm:$0xff]
        %v221 = vld [vmem:[%s192 + $0x18] sm:$0xff]
        %v222 = vld [vmem:[%s1] sm:$0xff]
        %v223 = vld [vmem:[%s1 + $0x8] sm:$0xff]
        %v224 = vld [vmem:[%s2] sm:$0xff]
        %v225 = vld [vmem:[%s3] sm:$0xff]
        %vm226 = vcmask 130048
        %v228 = vsel %vm226, %v218, 0
        %v231 = vsel %vm226, %v219, 0
        %v234 = vsel %vm226, %v220, 0
        %v237 = vsel %vm226, %v221, 0
        %239 = vmatpush.msra.mxu0 0.0
        %240 = vmatpush.msra.mxu0 0.0
        %241 = vmatpush.msra.mxu0 0.0
        %242 = vmatpush.msra.mxu0 0.0
        %243 = vmatpush.msra.mxu0 0.0
        %244 = vmatpush.msra.mxu0 0.0
        %245 = vmatpush.msra.mxu0 0.0
        %246 = vmatpush.msra.mxu0 0.0
        %247 = vmatpush.msra.mxu0 0.0
        %248 = vmatpush.msra.mxu0 0.0
        %249 = vmatpush.msra.mxu0 0.0
        %250 = vmatpush.msra.mxu0 0.0
        %251 = vmatpush.msra.mxu0 0.0
        %252 = vmatpush.msra.mxu0 0.0
        %253 = vmatpush.msra.mxu0 %v223
        %254 = vmatpush.msra.mxu0 %v222
        %255 = vmatmul.f32.gmra.mxu0 %v228
        %v256 = vpop.f32.mrf.mxu0
        %v257 = vadd.f32 0.0, %v256
        %258 = vmatmul.f32.gmra.mxu0 %v231
        %v259 = vpop.f32.mrf.mxu0
        %v260 = vadd.f32 0.0, %v259
        %261 = vmatmul.f32.gmra.mxu0 %v234
        %v262 = vpop.f32.mrf.mxu0
        %v263 = vadd.f32 0.0, %v262
        %264 = vmatmul.f32.gmra.mxu0 %v237
        %v265 = vpop.f32.mrf.mxu0
        %v266 = vadd.f32 0.0, %v265
        %267 = vdwg.mxu0
        %269 = vset.pattern.permute.xlu0 0
        %270 = vperm.xlu0 %269, %v225
        %v271 = vpop.permute.xlu0 %270
        %v277 = vrot.slane %v260, 7
        %vm278 = vcmask 1041409
        %v279 = vsel %vm278, %v277, %v257
        %v280 = vrot.slane %v263, 6
        %vm281 = vcmask 1042434
        %v282 = vsel %vm281, %v280, %v279
        %v283 = vrot.slane %v266, 5
        %vm284 = vcmask 1043459
        %v285 = vsel %vm284, %v283, %v282
        %vm286 = vcmask 31744
        %v288 = vsel %vm286, %v224, 0
        %vm290 = vcmask 1043456
        %v291 = vsel %vm290, %v285, 0
        %293 = vmatpush.msra.mxu0 0.0
        %294 = vmatpush.msra.mxu0 0.0
        %295 = vmatpush.msra.mxu0 0.0
        %296 = vmatpush.msra.mxu0 0.0
        %297 = vmatpush.msra.mxu0 0.0
        %298 = vmatpush.msra.mxu0 0.0
        %299 = vmatpush.msra.mxu0 0.0
        %300 = vmatpush.msra.mxu0 0.0
        %301 = vmatpush.msra.mxu0 0.0
        %302 = vmatpush.msra.mxu0 0.0
        %303 = vmatpush.msra.mxu0 0.0
        %304 = vmatpush.msra.mxu0 0.0
        %305 = vmatpush.msra.mxu0 0.0
        %306 = vmatpush.msra.mxu0 0.0
        %307 = vmatpush.msra.mxu0 0.0
        %308 = vmatpush.msra.mxu0 %v291
        %309 = vmatmul.f32.gmra.mxu0 %v288
        %v310 = vpop.f32.mrf.mxu0
        %v311 = vadd.f32 %v271, %v310
        %312 = vdwg.mxu0
        %v314 = vrot.slane %v219, 7
        %v315 = vsel %vm278, %v314, %v218
        %v316 = vrot.slane %v220, 6
        %v317 = vsel %vm281, %v316, %v315
        %v318 = vrot.slane %v221, 5
        %v319 = vsel %vm284, %v318, %v317
        %v320 = vrot.slane 0.0, 4
        %vm321 = vcmask 1044484
        %v322 = vsel %vm321, %v320, %v319
        %v323 = vrot.slane 0.0, 3
        %vm324 = vcmask 1045509
        %v325 = vsel %vm324, %v323, %v322
        %v326 = vrot.slane 0.0, 2
        %vm327 = vcmask 1046534
        %v328 = vsel %vm327, %v326, %v325
        %v329 = vrot.slane 0.0, 1
        %vm330 = vcmask 1047559
        %v331 = vsel %vm330, %v329, %v328
        %v333 = vadd.f32 %v311, %v331
        %v334 = vmax.f32 %v333, 0.0
        %v336 = vrot.slane %v334, 1
        %v337 = vrot.slane %v334, 2
        %v338 = vrot.slane %v334, 3
        %v339 = vrot.slane %v334, 4
        %v340 = vrot.slane %v334, 5
        %v341 = vrot.slane %v334, 6
        %v342 = vrot.slane %v334, 7
        %vm350 = vcmask 122880
        %351 = vst.msk [vmem:[%s217] sm:$0x1] %vm350, %v334
        %352 = vst.msk [vmem:[%s217 + $0x8] sm:$0x1] %vm350, %v336
        %353 = vst.msk [vmem:[%s217 + $0x10] sm:$0x1] %vm350, %v337
        %354 = vst.msk [vmem:[%s217 + $0x18] sm:$0x1] %vm350, %v338
        %355 = vst.msk [vmem:[%s217 + $0x20] sm:$0x1] %vm350, %v339
        %356 = vst.msk [vmem:[%s217 + $0x28] sm:$0x1] %vm350, %v340
        %357 = vst.msk [vmem:[%s217 + $0x30] sm:$0x1] %vm350, %v341
        %358 = vst.msk [vmem:[%s217 + $0x38] sm:$0x1] %vm350, %v342
        %v359 = vrot.slane %v257, 1
        %v360 = vsel %vm278, %v260, %v359
        %v361 = vrot.slane %v263, 7
        %v362 = vsel %vm281, %v361, %v360
        %v363 = vrot.slane %v266, 6
        %v364 = vsel %vm284, %v363, %v362
        %v365 = vsel %vm290, %v364, 0
        %367 = vmatpush.msra.mxu0 0.0
        %368 = vmatpush.msra.mxu0 0.0
        %369 = vmatpush.msra.mxu0 0.0
        %370 = vmatpush.msra.mxu0 0.0
        %371 = vmatpush.msra.mxu0 0.0
        %372 = vmatpush.msra.mxu0 0.0
        %373 = vmatpush.msra.mxu0 0.0
        %374 = vmatpush.msra.mxu0 0.0
        %375 = vmatpush.msra.mxu0 0.0
        %376 = vmatpush.msra.mxu0 0.0
        %377 = vmatpush.msra.mxu0 0.0
        %378 = vmatpush.msra.mxu0 0.0
        %379 = vmatpush.msra.mxu0 0.0
        %380 = vmatpush.msra.mxu0 0.0
        %381 = vmatpush.msra.mxu0 0.0
        %382 = vmatpush.msra.mxu0 %v365
        %383 = vmatmul.f32.gmra.mxu0 %v288
        %v384 = vpop.f32.mrf.mxu0
        %v385 = vadd.f32 %v271, %v384
        %386 = vdwg.mxu0
        %v387 = vrot.slane %v218, 1
        %v388 = vsel %vm278, %v219, %v387
        %v389 = vrot.slane %v220, 7
        %v390 = vsel %vm281, %v389, %v388
        %v391 = vrot.slane %v221, 6
        %v392 = vsel %vm284, %v391, %v390
        %v393 = vrot.slane 0.0, 5
        %v394 = vsel %vm321, %v393, %v392
        %v395 = vsel %vm324, %v320, %v394
        %v396 = vsel %vm327, %v323, %v395
        %v397 = vsel %vm330, %v326, %v396
        %v399 = vadd.f32 %v385, %v397
        %v400 = vmax.f32 %v399, 0.0
        %v402 = vrot.slane %v400, 1
        %v403 = vrot.slane %v400, 2
        %v404 = vrot.slane %v400, 3
        %v405 = vrot.slane %v400, 4
        %v406 = vrot.slane %v400, 5
        %v407 = vrot.slane %v400, 6
        %v408 = vrot.slane %v400, 7
        %416 = vst.msk [vmem:[%s217 + $0x1] sm:$0x1] %vm350, %v400
        %417 = vst.msk [vmem:[%s217 + $0x9] sm:$0x1] %vm350, %v402
        %418 = vst.msk [vmem:[%s217 + $0x11] sm:$0x1] %vm350, %v403
        %419 = vst.msk [vmem:[%s217 + $0x19] sm:$0x1] %vm350, %v404
        %420 = vst.msk [vmem:[%s217 + $0x21] sm:$0x1] %vm350, %v405
        %421 = vst.msk [vmem:[%s217 + $0x29] sm:$0x1] %vm350, %v406
        %422 = vst.msk [vmem:[%s217 + $0x31] sm:$0x1] %vm350, %v407
        %423 = vst.msk [vmem:[%s217 + $0x39] sm:$0x1] %vm350, %v408
        %v424 = vrot.slane %v257, 2
        %v425 = vrot.slane %v260, 1
        %v426 = vsel %vm278, %v425, %v424
        %v427 = vsel %vm281, %v263, %v426
        %v428 = vrot.slane %v266, 7
        %v429 = vsel %vm284, %v428, %v427
        %v430 = vsel %vm290, %v429, 0
        %432 = vmatpush.msra.mxu0 0.0
        %433 = vmatpush.msra.mxu0 0.0
        %434 = vmatpush.msra.mxu0 0.0
        %435 = vmatpush.msra.mxu0 0.0
        %436 = vmatpush.msra.mxu0 0.0
        %437 = vmatpush.msra.mxu0 0.0
        %438 = vmatpush.msra.mxu0 0.0
        %439 = vmatpush.msra.mxu0 0.0
        %440 = vmatpush.msra.mxu0 0.0
        %441 = vmatpush.msra.mxu0 0.0
        %442 = vmatpush.msra.mxu0 0.0
        %443 = vmatpush.msra.mxu0 0.0
        %444 = vmatpush.msra.mxu0 0.0
        %445 = vmatpush.msra.mxu0 0.0
        %446 = vmatpush.msra.mxu0 0.0
        %447 = vmatpush.msra.mxu0 %v430
        %448 = vmatmul.f32.gmra.mxu0 %v288
        %v449 = vpop.f32.mrf.mxu0
        %v450 = vadd.f32 %v271, %v449
        %451 = vdwg.mxu0
        %v452 = vrot.slane %v218, 2
        %v453 = vrot.slane %v219, 1
        %v454 = vsel %vm278, %v453, %v452
        %v455 = vsel %vm281, %v220, %v454
        %v456 = vrot.slane %v221, 7
        %v457 = vsel %vm284, %v456, %v455
        %v458 = vrot.slane 0.0, 6
        %v459 = vsel %vm321, %v458, %v457
        %v460 = vsel %vm324, %v393, %v459
        %v461 = vsel %vm327, %v320, %v460
        %v462 = vsel %vm330, %v323, %v461
        %v464 = vadd.f32 %v450, %v462
        %v465 = vmax.f32 %v464, 0.0
        %v467 = vrot.slane %v465, 1
        %v468 = vrot.slane %v465, 2
        %v469 = vrot.slane %v465, 3
        %v470 = vrot.slane %v465, 4
        %v471 = vrot.slane %v465, 5
        %v472 = vrot.slane %v465, 6
        %v473 = vrot.slane %v465, 7
        %481 = vst.msk [vmem:[%s217 + $0x2] sm:$0x1] %vm350, %v465
        %482 = vst.msk [vmem:[%s217 + $0xa] sm:$0x1] %vm350, %v467
        %483 = vst.msk [vmem:[%s217 + $0x12] sm:$0x1] %vm350, %v468
        %484 = vst.msk [vmem:[%s217 + $0x1a] sm:$0x1] %vm350, %v469
        %485 = vst.msk [vmem:[%s217 + $0x22] sm:$0x1] %vm350, %v470
        %486 = vst.msk [vmem:[%s217 + $0x2a] sm:$0x1] %vm350, %v471
        %487 = vst.msk [vmem:[%s217 + $0x32] sm:$0x1] %vm350, %v472
        %488 = vst.msk [vmem:[%s217 + $0x3a] sm:$0x1] %vm350, %v473
        %v489 = vrot.slane %v257, 3
        %v490 = vrot.slane %v260, 2
        %v491 = vsel %vm278, %v490, %v489
        %v492 = vrot.slane %v263, 1
        %v493 = vsel %vm281, %v492, %v491
        %v494 = vsel %vm284, %v266, %v493
        %v495 = vsel %vm290, %v494, 0
        %497 = vmatpush.msra.mxu0 0.0
        %498 = vmatpush.msra.mxu0 0.0
        %499 = vmatpush.msra.mxu0 0.0
        %500 = vmatpush.msra.mxu0 0.0
        %501 = vmatpush.msra.mxu0 0.0
        %502 = vmatpush.msra.mxu0 0.0
        %503 = vmatpush.msra.mxu0 0.0
        %504 = vmatpush.msra.mxu0 0.0
        %505 = vmatpush.msra.mxu0 0.0
        %506 = vmatpush.msra.mxu0 0.0
        %507 = vmatpush.msra.mxu0 0.0
        %508 = vmatpush.msra.mxu0 0.0
        %509 = vmatpush.msra.mxu0 0.0
        %510 = vmatpush.msra.mxu0 0.0
        %511 = vmatpush.msra.mxu0 0.0
        %512 = vmatpush.msra.mxu0 %v495
        %513 = vmatmul.f32.gmra.mxu0 %v288
        %v514 = vpop.f32.mrf.mxu0
        %v515 = vadd.f32 %v271, %v514
        %516 = vdwg.mxu0
        %v517 = vrot.slane %v218, 3
        %v518 = vrot.slane %v219, 2
        %v519 = vsel %vm278, %v518, %v517
        %v520 = vrot.slane %v220, 1
        %v521 = vsel %vm281, %v520, %v519
        %v522 = vsel %vm284, %v221, %v521
        %v523 = vrot.slane 0.0, 7
        %v524 = vsel %vm321, %v523, %v522
        %v525 = vsel %vm324, %v458, %v524
        %v526 = vsel %vm327, %v393, %v525
        %v527 = vsel %vm330, %v320, %v526
        %v529 = vadd.f32 %v515, %v527
        %v530 = vmax.f32 %v529, 0.0
        %v532 = vrot.slane %v530, 1
        %v533 = vrot.slane %v530, 2
        %v534 = vrot.slane %v530, 3
        %v535 = vrot.slane %v530, 4
        %v536 = vrot.slane %v530, 5
        %v537 = vrot.slane %v530, 6
        %v538 = vrot.slane %v530, 7
        %546 = vst.msk [vmem:[%s217 + $0x3] sm:$0x1] %vm350, %v530
        %547 = vst.msk [vmem:[%s217 + $0xb] sm:$0x1] %vm350, %v532
        %548 = vst.msk [vmem:[%s217 + $0x13] sm:$0x1] %vm350, %v533
        %549 = vst.msk [vmem:[%s217 + $0x1b] sm:$0x1] %vm350, %v534
        %550 = vst.msk [vmem:[%s217 + $0x23] sm:$0x1] %vm350, %v535
        %551 = vst.msk [vmem:[%s217 + $0x2b] sm:$0x1] %vm350, %v536
        %552 = vst.msk [vmem:[%s217 + $0x33] sm:$0x1] %vm350, %v537
        %553 = vst.msk [vmem:[%s217 + $0x3b] sm:$0x1] %vm350, %v538
        %v554 = vrot.slane %v257, 4
        %v555 = vrot.slane %v260, 3
        %v556 = vsel %vm278, %v555, %v554
        %v557 = vrot.slane %v263, 2
        %v558 = vsel %vm281, %v557, %v556
        %v559 = vrot.slane %v266, 1
        %v560 = vsel %vm284, %v559, %v558
        %v561 = vsel %vm290, %v560, 0
        %563 = vmatpush.msra.mxu0 0.0
        %564 = vmatpush.msra.mxu0 0.0
        %565 = vmatpush.msra.mxu0 0.0
        %566 = vmatpush.msra.mxu0 0.0
        %567 = vmatpush.msra.mxu0 0.0
        %568 = vmatpush.msra.mxu0 0.0
        %569 = vmatpush.msra.mxu0 0.0
        %570 = vmatpush.msra.mxu0 0.0
        %571 = vmatpush.msra.mxu0 0.0
        %572 = vmatpush.msra.mxu0 0.0
        %573 = vmatpush.msra.mxu0 0.0
        %574 = vmatpush.msra.mxu0 0.0
        %575 = vmatpush.msra.mxu0 0.0
        %576 = vmatpush.msra.mxu0 0.0
        %577 = vmatpush.msra.mxu0 0.0
        %578 = vmatpush.msra.mxu0 %v561
        %579 = vmatmul.f32.gmra.mxu0 %v288
        %v580 = vpop.f32.mrf.mxu0
        %v581 = vadd.f32 %v271, %v580
        %582 = vdwg.mxu0
        %v583 = vrot.slane %v218, 4
        %v584 = vrot.slane %v219, 3
        %v585 = vsel %vm278, %v584, %v583
        %v586 = vrot.slane %v220, 2
        %v587 = vsel %vm281, %v586, %v585
        %v588 = vrot.slane %v221, 1
        %v589 = vsel %vm284, %v588, %v587
        %v590 = vsel %vm321, 0.0, %v589
        %v591 = vsel %vm324, %v523, %v590
        %v592 = vsel %vm327, %v458, %v591
        %v593 = vsel %vm330, %v393, %v592
        %v595 = vadd.f32 %v581, %v593
        %v596 = vmax.f32 %v595, 0.0
        %v598 = vrot.slane %v596, 1
        %v599 = vrot.slane %v596, 2
        %v600 = vrot.slane %v596, 3
        %v601 = vrot.slane %v596, 4
        %v602 = vrot.slane %v596, 5
        %v603 = vrot.slane %v596, 6
        %v604 = vrot.slane %v596, 7
        %612 = vst.msk [vmem:[%s217 + $0x4] sm:$0x1] %vm350, %v596
        %613 = vst.msk [vmem:[%s217 + $0xc] sm:$0x1] %vm350, %v598
        %614 = vst.msk [vmem:[%s217 + $0x14] sm:$0x1] %vm350, %v599
        %615 = vst.msk [vmem:[%s217 + $0x1c] sm:$0x1] %vm350, %v600
        %616 = vst.msk [vmem:[%s217 + $0x24] sm:$0x1] %vm350, %v601
        %617 = vst.msk [vmem:[%s217 + $0x2c] sm:$0x1] %vm350, %v602
        %618 = vst.msk [vmem:[%s217 + $0x34] sm:$0x1] %vm350, %v603
        %619 = vst.msk [vmem:[%s217 + $0x3c] sm:$0x1] %vm350, %v604
        %v620 = vrot.slane %v257, 5
        %v621 = vrot.slane %v260, 4
        %v622 = vsel %vm278, %v621, %v620
        %v623 = vrot.slane %v263, 3
        %v624 = vsel %vm281, %v623, %v622
        %v625 = vrot.slane %v266, 2
        %v626 = vsel %vm284, %v625, %v624
        %v627 = vsel %vm290, %v626, 0
        %629 = vmatpush.msra.mxu0 0.0
        %630 = vmatpush.msra.mxu0 0.0
        %631 = vmatpush.msra.mxu0 0.0
        %632 = vmatpush.msra.mxu0 0.0
        %633 = vmatpush.msra.mxu0 0.0
        %634 = vmatpush.msra.mxu0 0.0
        %635 = vmatpush.msra.mxu0 0.0
        %636 = vmatpush.msra.mxu0 0.0
        %637 = vmatpush.msra.mxu0 0.0
        %638 = vmatpush.msra.mxu0 0.0
        %639 = vmatpush.msra.mxu0 0.0
        %640 = vmatpush.msra.mxu0 0.0
        %641 = vmatpush.msra.mxu0 0.0
        %642 = vmatpush.msra.mxu0 0.0
        %643 = vmatpush.msra.mxu0 0.0
        %644 = vmatpush.msra.mxu0 %v627
        %645 = vmatmul.f32.gmra.mxu0 %v288
        %v646 = vpop.f32.mrf.mxu0
        %v647 = vadd.f32 %v271, %v646
        %648 = vdwg.mxu0
        %v649 = vrot.slane %v218, 5
        %v650 = vrot.slane %v219, 4
        %v651 = vsel %vm278, %v650, %v649
        %v652 = vrot.slane %v220, 3
        %v653 = vsel %vm281, %v652, %v651
        %v654 = vrot.slane %v221, 2
        %v655 = vsel %vm284, %v654, %v653
        %v656 = vsel %vm321, %v329, %v655
        %v657 = vsel %vm324, 0.0, %v656
        %v658 = vsel %vm327, %v523, %v657
        %v659 = vsel %vm330, %v458, %v658
        %v661 = vadd.f32 %v647, %v659
        %v662 = vmax.f32 %v661, 0.0
        %v664 = vrot.slane %v662, 1
        %v665 = vrot.slane %v662, 2
        %v666 = vrot.slane %v662, 3
        %v667 = vrot.slane %v662, 4
        %v668 = vrot.slane %v662, 5
        %v669 = vrot.slane %v662, 6
        %v670 = vrot.slane %v662, 7
        %678 = vst.msk [vmem:[%s217 + $0x5] sm:$0x1] %vm350, %v662
        %679 = vst.msk [vmem:[%s217 + $0xd] sm:$0x1] %vm350, %v664
        %680 = vst.msk [vmem:[%s217 + $0x15] sm:$0x1] %vm350, %v665
        %681 = vst.msk [vmem:[%s217 + $0x1d] sm:$0x1] %vm350, %v666
        %682 = vst.msk [vmem:[%s217 + $0x25] sm:$0x1] %vm350, %v667
        %683 = vst.msk [vmem:[%s217 + $0x2d] sm:$0x1] %vm350, %v668
        %684 = vst.msk [vmem:[%s217 + $0x35] sm:$0x1] %vm350, %v669
        %685 = vst.msk [vmem:[%s217 + $0x3d] sm:$0x1] %vm350, %v670
        %v686 = vrot.slane %v257, 6
        %v687 = vrot.slane %v260, 5
        %v688 = vsel %vm278, %v687, %v686
        %v689 = vrot.slane %v263, 4
        %v690 = vsel %vm281, %v689, %v688
        %v691 = vrot.slane %v266, 3
        %v692 = vsel %vm284, %v691, %v690
        %v693 = vsel %vm290, %v692, 0
        %695 = vmatpush.msra.mxu0 0.0
        %696 = vmatpush.msra.mxu0 0.0
        %697 = vmatpush.msra.mxu0 0.0
        %698 = vmatpush.msra.mxu0 0.0
        %699 = vmatpush.msra.mxu0 0.0
        %700 = vmatpush.msra.mxu0 0.0
        %701 = vmatpush.msra.mxu0 0.0
        %702 = vmatpush.msra.mxu0 0.0
        %703 = vmatpush.msra.mxu0 0.0
        %704 = vmatpush.msra.mxu0 0.0
        %705 = vmatpush.msra.mxu0 0.0
        %706 = vmatpush.msra.mxu0 0.0
        %707 = vmatpush.msra.mxu0 0.0
        %708 = vmatpush.msra.mxu0 0.0
        %709 = vmatpush.msra.mxu0 0.0
        %710 = vmatpush.msra.mxu0 %v693
        %711 = vmatmul.f32.gmra.mxu0 %v288
        %v712 = vpop.f32.mrf.mxu0
        %v713 = vadd.f32 %v271, %v712
        %714 = vdwg.mxu0
        %v715 = vrot.slane %v218, 6
        %v716 = vrot.slane %v219, 5
        %v717 = vsel %vm278, %v716, %v715
        %v718 = vrot.slane %v220, 4
        %v719 = vsel %vm281, %v718, %v717
        %v720 = vrot.slane %v221, 3
        %v721 = vsel %vm284, %v720, %v719
        %v722 = vsel %vm321, %v326, %v721
        %v723 = vsel %vm324, %v329, %v722
        %v724 = vsel %vm327, 0.0, %v723
        %v725 = vsel %vm330, %v523, %v724
        %v727 = vadd.f32 %v713, %v725
        %v728 = vmax.f32 %v727, 0.0
        %v730 = vrot.slane %v728, 1
        %v731 = vrot.slane %v728, 2
        %v732 = vrot.slane %v728, 3
        %v733 = vrot.slane %v728, 4
        %v734 = vrot.slane %v728, 5
        %v735 = vrot.slane %v728, 6
        %v736 = vrot.slane %v728, 7
        %744 = vst.msk [vmem:[%s217 + $0x6] sm:$0x1] %vm350, %v728
        %745 = vst.msk [vmem:[%s217 + $0xe] sm:$0x1] %vm350, %v730
        %746 = vst.msk [vmem:[%s217 + $0x16] sm:$0x1] %vm350, %v731
        %747 = vst.msk [vmem:[%s217 + $0x1e] sm:$0x1] %vm350, %v732
        %748 = vst.msk [vmem:[%s217 + $0x26] sm:$0x1] %vm350, %v733
        %749 = vst.msk [vmem:[%s217 + $0x2e] sm:$0x1] %vm350, %v734
        %750 = vst.msk [vmem:[%s217 + $0x36] sm:$0x1] %vm350, %v735
        %751 = vst.msk [vmem:[%s217 + $0x3e] sm:$0x1] %vm350, %v736
        %v752 = vrot.slane %v257, 7
        %v753 = vrot.slane %v260, 6
        %v754 = vsel %vm278, %v753, %v752
        %v755 = vrot.slane %v263, 5
        %v756 = vsel %vm281, %v755, %v754
        %v757 = vrot.slane %v266, 4
        %v758 = vsel %vm284, %v757, %v756
        %v759 = vsel %vm290, %v758, 0
        %761 = vmatpush.msra.mxu0 0.0
        %762 = vmatpush.msra.mxu0 0.0
        %763 = vmatpush.msra.mxu0 0.0
        %764 = vmatpush.msra.mxu0 0.0
        %765 = vmatpush.msra.mxu0 0.0
        %766 = vmatpush.msra.mxu0 0.0
        %767 = vmatpush.msra.mxu0 0.0
        %768 = vmatpush.msra.mxu0 0.0
        %769 = vmatpush.msra.mxu0 0.0
        %770 = vmatpush.msra.mxu0 0.0
        %771 = vmatpush.msra.mxu0 0.0
        %772 = vmatpush.msra.mxu0 0.0
        %773 = vmatpush.msra.mxu0 0.0
        %774 = vmatpush.msra.mxu0 0.0
        %775 = vmatpush.msra.mxu0 0.0
        %776 = vmatpush.msra.mxu0 %v759
        %777 = vmatmul.f32.gmra.mxu0 %v288
        %v778 = vpop.f32.mrf.mxu0
        %v779 = vadd.f32 %v271, %v778
        %780 = vdwg.mxu0
        %v781 = vrot.slane %v218, 7
        %v782 = vrot.slane %v219, 6
        %v783 = vsel %vm278, %v782, %v781
        %v784 = vrot.slane %v220, 5
        %v785 = vsel %vm281, %v784, %v783
        %v786 = vrot.slane %v221, 4
        %v787 = vsel %vm284, %v786, %v785
        %v788 = vsel %vm321, %v323, %v787
        %v789 = vsel %vm324, %v326, %v788
        %v790 = vsel %vm327, %v329, %v789
        %v791 = vsel %vm330, 0.0, %v790
        %v793 = vadd.f32 %v779, %v791
        %v794 = vmax.f32 %v793, 0.0
        %v796 = vrot.slane %v794, 1
        %v797 = vrot.slane %v794, 2
        %v798 = vrot.slane %v794, 3
        %v799 = vrot.slane %v794, 4
        %v800 = vrot.slane %v794, 5
        %v801 = vrot.slane %v794, 6
        %v802 = vrot.slane %v794, 7
        %810 = vst.msk [vmem:[%s217 + $0x7] sm:$0x1] %vm350, %v794
        %811 = vst.msk [vmem:[%s217 + $0xf] sm:$0x1] %vm350, %v796
        %812 = vst.msk [vmem:[%s217 + $0x17] sm:$0x1] %vm350, %v797
        %813 = vst.msk [vmem:[%s217 + $0x1f] sm:$0x1] %vm350, %v798
        %814 = vst.msk [vmem:[%s217 + $0x27] sm:$0x1] %vm350, %v799
        %815 = vst.msk [vmem:[%s217 + $0x2f] sm:$0x1] %vm350, %v800
        %816 = vst.msk [vmem:[%s217 + $0x37] sm:$0x1] %vm350, %v801
        %817 = vst.msk [vmem:[%s217 + $0x3f] sm:$0x1] %vm350, %v802
        %s818 = sand.u32 %s118, 1
        %s819 = scalar_lea.sflag [#allocation4], %s818
        %s820 = sand.u32 %s118, 1
        %s821 = smul.addr %s820, 64
        %s822 = scalar_lea.vmem [#allocation5], %s821
        // Predicated region
        $region41: #{tpu_custom_call.1} parent=35 // pred_check
          %p823 = pneg %p128
        $region42: #{tpu_custom_call.1} parent=35 // pred_check_branch
          %825 = sbr.rel (%p823) target = $region44
        $region43: #{tpu_custom_call.1} parent=35 // pred_region
          %827 = vsyncadd %s819, 0
          %s828 = smul.addr %s21, 8
          %s829 = smul.addr %s828, 8
          %s830 = scalar_lea.hbm %s4, %s829
          %s831 = sshll.u32 %s822, 4
          %s832 = int_to_ptr.vmem [resolvable:$true] %s831
          %s833 = sshll.u32 %s830, 4
          %s834 = int_to_ptr.hbm [resolvable:$true] %s833
          %839 = dma.vmem_to_hbm [thread:$0]  %s832, 1024, %s834, %s819, 128, 128, 8
        $region44: #{tpu_custom_call.1} parent=35 // pred_fallthru
          _
      $region36: #{tpu_custom_call.1} parent=5 // pred_fallthru
        _
      %p840 = scmp.le.s32.totalorder 2, %s16
      // Predicated region
      $region45: #{tpu_custom_call.1} parent=5 // pred_check
        %p841 = pneg %p840
      $region46: #{tpu_custom_call.1} parent=5 // pred_check_branch
        %843 = sbr.rel (%p841) target = $region48
      $region47: #{tpu_custom_call.1} parent=5 // pred_region
        %s844 = ssub.s32 %s16, 2
        // Predicated region
        $region49: #{tpu_custom_call.1} parent=47 // pred_check
          %p845 = pneg %p134
        $region50: #{tpu_custom_call.1} parent=47 // pred_check_branch
          %847 = sbr.rel (%p845) target = $region52
        $region51: #{tpu_custom_call.1} parent=47 // pred_region
          %s848 = sand.u32 %s119, 1
          %s849 = scalar_lea.sflag [#allocation4], %s848
          %s850 = sand.u32 %s119, 1
          %s851 = smul.addr %s850, 64
          %s852 = scalar_lea.vmem [#allocation5], %s851
          %854 = dma.done %s849, 1024
        $region52: #{tpu_custom_call.1} parent=47 // pred_fallthru
          _
      $region48: #{tpu_custom_call.1} parent=5 // pred_fallthru
        _
    $region6: #{tpu_custom_call.1} parent=1 // loop_footer
      %s20 = sadd.s32 1, %s16
    $region7: #{tpu_custom_call.1} parent=1 // loop_footer_branch
      %15 = sbr.rel target = $region3
    $region8: #{tpu_custom_call.1} parent=1 // loop_exit
      _
    %855 = vsyncpa [#allocation3], 1
    %s856 = scalar_lea.sflag [#allocation3], 1
    %857 = vsyncpa %s856, 1
    %858 = vsyncpa [#allocation4], 1
    %s859 = scalar_lea.sflag [#allocation4], 1
    %860 = vsyncpa %s859, 1

</llo_original>
